<compile_context>
chip_gen: v7x
topology: tpu7x:2x2x1
jax: 0.10.0
libtpu: 0.0.40
codegen_flags: <defaults>
</compile_context>

<pallas_src>
import functools

import jax
import jax.numpy as jnp
from jax.experimental import pallas as pl
from jax.experimental.pallas import tpu as pltpu

LANES = 128
DEFAULT_BLOCK_ROWS = 4096   # 4096x128 f32 = 2 MiB per input block (sweep 2048-8192)


def _make_dice_kernel(block_rows: int, n_valid: int, need_mask: bool):
    """Build the dice-sums kernel for a given block size / element count."""
    block_elems = block_rows * LANES

    def kernel(x_ref, t_ref, acc_ref):
        i = pl.program_id(1)

        @pl.when(i == 0)
        def _init():
            acc_ref[...] = jnp.zeros_like(acc_ref)

        # Cast inside the kernel only; inputs stream in their native dtype.
        x = x_ref[...].astype(jnp.float32)
        t = t_ref[...].astype(jnp.float32)
        s = jax.nn.sigmoid(x)

        def _accumulate(sv, tv):
            # Lane-dense (1,128) partials accumulated into rows 0..2 of the
            # resident (8,128) accumulator slab; pure VPU/XLU work, hidden
            # under the input DMAs.
            acc_ref[0:1, :] += jnp.sum(sv * tv, axis=0, keepdims=True)
            acc_ref[1:2, :] += jnp.sum(sv, axis=0, keepdims=True)
            acc_ref[2:3, :] += jnp.sum(tv, axis=0, keepdims=True)

        if need_mask:
            # Nominal (unclamped) linear block index; clamped blocks re-read
            # valid data but every element is masked out below.
            # TODO(synk): int32 index math limits this to < 2^31 elements.
            blk = pl.program_id(0) * pl.num_programs(1) + i
            block_start = blk * block_elems

            @pl.when(block_start + block_elems <= n_valid)
            def _full_block():
                _accumulate(s, t)

            @pl.when(block_start + block_elems > n_valid)
            def _tail_block():
                # Only tail / overhanging blocks pay the iota + select cost.
                row = jax.lax.broadcasted_iota(jnp.int32, (block_rows, LANES), 0)
                lane = jax.lax.broadcasted_iota(jnp.int32, (block_rows, LANES), 1)
                gidx = block_start + row * LANES + lane
                valid = gidx < n_valid
                zero = jnp.float32(0.0)
                _accumulate(jnp.where(valid, s, zero), jnp.where(valid, t, zero))
        else:
            _accumulate(s, t)

    return kernel


@functools.partial(jax.jit, static_argnames=("smooth", "block_rows"))
def dice_loss(inputs, targets, smooth: float = 1.0, block_rows: int | None = None):
    # Flatten (matches torch .view(-1)); keep native dtypes.
    x = inputs.reshape(-1)
    t = targets.reshape(-1)
    n = x.shape[0]

    if n % LANES != 0:
        # TODO(synk): non-128-divisible element counts pay one small pad copy;
        # the padded elements are masked out in-kernel so their value is
        # irrelevant.
        pad = LANES - (n % LANES)
        x = jnp.pad(x, (0, pad))
        t = jnp.pad(t, (0, pad))

    rows = x.shape[0] // LANES
    x2 = x.reshape(rows, LANES)   # free reshape (lane-dense layout)
    t2 = t.reshape(rows, LANES)

    if block_rows is None:
        block_rows = DEFAULT_BLOCK_ROWS
    block_rows = min(block_rows, rows)
    num_tiles = pl.cdiv(rows, block_rows)

    # Leading "parallel" axis: 2-way TensorCore split on v7x, two serial
    # chunks on the single-core v5e/v6e.  Each split owns an accumulator slab.
    nsplit = 2 if num_tiles >= 2 else 1
    tiles_per_split = pl.cdiv(num_tiles, nsplit)

    covered = nsplit * tiles_per_split * block_rows * LANES
    # Mask needed iff the grid nominally covers more elements than the true
    # count (lane padding, partial last block, or an overhanging split block).
    need_mask = covered != n

    kernel = _make_dice_kernel(block_rows, n, need_mask)

    if nsplit * tiles_per_split != num_tiles:
        def in_map(c, i):
            # Clamp so overhanging block indices never leave the array; their
            # contribution is fully masked out in-kernel.
            return (jnp.minimum(c * tiles_per_split + i, num_tiles - 1), 0)
    else:
        def in_map(c, i):
            return (c * tiles_per_split + i, 0)

    acc = pl.pallas_call(
        kernel,
        out_shape=jax.ShapeDtypeStruct((nsplit, 8, LANES), jnp.float32),
        grid_spec=pltpu.PrefetchScalarGridSpec(
            num_scalar_prefetch=0,
            grid=(nsplit, tiles_per_split),
            in_specs=[
                pl.BlockSpec((block_rows, LANES), in_map),
                pl.BlockSpec((block_rows, LANES), in_map),
            ],
            # Leading dim squeezed: each split sees its own resident (8,128)
            # slab; written back only when the split index changes / at end.
            out_specs=pl.BlockSpec((None, 8, LANES), lambda c, i: (c, 0, 0)),
        ),
        compiler_params=pltpu.CompilerParams(
            dimension_semantics=("parallel", "arbitrary"),
            vmem_limit_bytes=32 * 1024 * 1024,
        ),
    )(x2, t2)

    # Tiny final cross-lane / cross-split reduction done in plain jnp.
    inter = jnp.sum(acc[:, 0, :])
    s_in = jnp.sum(acc[:, 1, :])
    s_tg = jnp.sum(acc[:, 2, :])
    dice = (2.0 * inter + smooth) / (s_in + s_tg + smooth)
    return 1.0 - dice


def _reference(inputs, targets, smooth: float = 1.0):
    x = jax.nn.sigmoid(inputs.astype(jnp.float32)).reshape(-1)
    t = targets.astype(jnp.float32).reshape(-1)
    inter = jnp.sum(x * t)
    dice = (2.0 * inter + smooth) / (jnp.sum(x) + jnp.sum(t) + smooth)
    return 1.0 - dice


if __name__ == "__main__":
    key = jax.random.PRNGKey(0)
    k1, k2, k3, k4, k5, k6 = jax.random.split(key, 6)

    smooth = 1.0

    # Test 1: f32 NCHW logits, 128-divisible element count (zero-copy path,
    # single tile, no mask).
    x = jax.random.normal(k1, (2, 4, 16, 16), dtype=jnp.float32)
    tgt = (jax.random.uniform(k2, (2, 4, 16, 16)) > 0.5).astype(jnp.float32)
    loss = jax.block_until_ready(dice_loss(x, tgt, smooth=smooth))
    ref = _reference(x, tgt, smooth=smooth)
    assert jnp.allclose(loss, ref, atol=1e-5, rtol=1e-5), (loss, ref)

    # Test 2: bf16 logits, non-128-divisible element count (masked lane-pad path).
    xb = jax.random.normal(k3, (2, 3, 7, 11), dtype=jnp.bfloat16)
    tb = (jax.random.uniform(k4, (2, 3, 7, 11)) > 0.5).astype(jnp.bfloat16)
    loss2 = jax.block_until_ready(dice_loss(xb, tb, smooth=smooth))
    ref2 = _reference(xb, tb, smooth=smooth)
    assert jnp.allclose(loss2, ref2, atol=1e-4, rtol=1e-4), (loss2, ref2)

    # Test 3: multi-tile + 2-way split + partial last block + overhanging
    # clamped block (small block_rows to exercise the path at small shapes).
    xc = jax.random.normal(k5, (2, 4, 16, 17), dtype=jnp.float32)   # 2176 elems = 17 rows
    tc = (jax.random.uniform(k6, (2, 4, 16, 17)) > 0.5).astype(jnp.float32)
    loss3 = jax.block_until_ready(dice_loss(xc, tc, smooth=smooth, block_rows=8))
    ref3 = _reference(xc, tc, smooth=smooth)
    assert jnp.allclose(loss3, ref3, atol=1e-5, rtol=1e-5), (loss3, ref3)

    print("KERNEL_OK")
</pallas_src>

<mosaic_0001>
module attributes {stable_mosaic.version = 11 : i64} {
  func.func @kernel(%arg0: i32, %arg1: i32, %arg2: memref<16x128xf32, #tpu.memory_space<vmem>>, %arg3: memref<16x128xf32, #tpu.memory_space<vmem>>, %arg4: memref<1x8x128xf32, #tpu.memory_space<vmem>>) attributes {dimension_semantics = [#tpu.dimension_semantics<parallel>, #tpu.dimension_semantics<arbitrary>], iteration_bounds = array<i64: 1, 1>, scalar_prefetch = 0 : i64, scratch_operands = 0 : i64, tpu.core_type = #tpu.core_type<tc>, window_params = [{transform_indices = @transform_0, window_bounds = array<i64: 16, 128>}, {transform_indices = @transform_1, window_bounds = array<i64: 16, 128>}, {transform_indices = @transform_2, window_bounds = array<i64: 1, 8, 128>}]} {
    %c0_i32 = arith.constant 0 : i32
    %0 = arith.cmpi eq, %arg1, %c0_i32 : i32
    %1 = arith.extui %0 : i1 to i32
    %c0_i32_0 = arith.constant 0 : i32
    %2 = arith.cmpi ne, %1, %c0_i32_0 : i32
    scf.if %2 {
      %cst_23 = arith.constant 0.000000e+00 : f32
      %35 = vector.broadcast %cst_23 : f32 to vector<8x128xf32>
      %c0_24 = arith.constant 0 : index
      %c0_25 = arith.constant 0 : index
      %c0_26 = arith.constant 0 : index
      %36 = vector.load %arg4[%c0_24, %c0_25, %c0_26] : memref<1x8x128xf32, #tpu.memory_space<vmem>>, vector<1x8x128xf32>
      %37 = vector.shape_cast %36 : vector<1x8x128xf32> to vector<8x128xf32>
      %38 = vector.shape_cast %35 : vector<8x128xf32> to vector<1x8x128xf32>
      tpu.vector_store %arg4[%c0_24, %c0_25, %c0_26], %38 {strides = array<i32>} : memref<1x8x128xf32, #tpu.memory_space<vmem>>, vector<1x8x128xf32>,
    } else {
    }
    %c0 = arith.constant 0 : index
    %c0_1 = arith.constant 0 : index
    %3 = vector.load %arg2[%c0, %c0_1] : memref<16x128xf32, #tpu.memory_space<vmem>>, vector<16x128xf32>
    %c0_2 = arith.constant 0 : index
    %c0_3 = arith.constant 0 : index
    %4 = vector.load %arg3[%c0_2, %c0_3] : memref<16x128xf32, #tpu.memory_space<vmem>>, vector<16x128xf32>
    %5 = arith.negf %3 : vector<16x128xf32>
    %6 = math.exp %5 : vector<16x128xf32>
    %cst = arith.constant 1.000000e+00 : f32
    %7 = vector.broadcast %cst : f32 to vector<16x128xf32>
    %8 = arith.addf %7, %6 : vector<16x128xf32>
    %9 = arith.divf %7, %8 : vector<16x128xf32>
    %c0_4 = arith.constant 0 : index
    %c0_5 = arith.constant 0 : index
    %c0_6 = arith.constant 0 : index
    %10 = vector.load %arg4[%c0_4, %c0_5, %c0_6] : memref<1x8x128xf32, #tpu.memory_space<vmem>>, vector<1x1x128xf32>
    %11 = vector.shape_cast %10 : vector<1x1x128xf32> to vector<1x128xf32>
    %12 = arith.mulf %9, %4 : vector<16x128xf32>
    %cst_7 = arith.constant dense<0.000000e+00> : vector<128xf32>
    %13 = vector.multi_reduction <add>, %12, %cst_7 [0] : vector<16x128xf32> to vector<128xf32>
    %14 = vector.shape_cast %13 : vector<128xf32> to vector<1x128xf32>
    %15 = arith.addf %11, %14 : vector<1x128xf32>
    %c0_8 = arith.constant 0 : index
    %c0_9 = arith.constant 0 : index
    %c0_10 = arith.constant 0 : index
    %16 = vector.load %arg4[%c0_8, %c0_9, %c0_10] : memref<1x8x128xf32, #tpu.memory_space<vmem>>, vector<1x1x128xf32>
    %17 = vector.shape_cast %16 : vector<1x1x128xf32> to vector<1x128xf32>
    %18 = vector.shape_cast %15 : vector<1x128xf32> to vector<1x1x128xf32>
    tpu.vector_store %arg4[%c0_8, %c0_9, %c0_10], %18 {strides = array<i32>} : memref<1x8x128xf32, #tpu.memory_space<vmem>>, vector<1x1x128xf32>,
    %c0_11 = arith.constant 0 : index
    %c1 = arith.constant 1 : index
    %c0_12 = arith.constant 0 : index
    %19 = vector.load %arg4[%c0_11, %c1, %c0_12] : memref<1x8x128xf32, #tpu.memory_space<vmem>>, vector<1x1x128xf32>
    %20 = vector.shape_cast %19 : vector<1x1x128xf32> to vector<1x128xf32>
    %cst_13 = arith.constant dense<0.000000e+00> : vector<128xf32>
    %21 = vector.multi_reduction <add>, %9, %cst_13 [0] : vector<16x128xf32> to vector<128xf32>
    %22 = vector.shape_cast %21 : vector<128xf32> to vector<1x128xf32>
    %23 = arith.addf %20, %22 : vector<1x128xf32>
    %c0_14 = arith.constant 0 : index
    %c1_15 = arith.constant 1 : index
    %c0_16 = arith.constant 0 : index
    %24 = vector.load %arg4[%c0_14, %c1_15, %c0_16] : memref<1x8x128xf32, #tpu.memory_space<vmem>>, vector<1x1x128xf32>
    %25 = vector.shape_cast %24 : vector<1x1x128xf32> to vector<1x128xf32>
    %26 = vector.shape_cast %23 : vector<1x128xf32> to vector<1x1x128xf32>
    tpu.vector_store %arg4[%c0_14, %c1_15, %c0_16], %26 {strides = array<i32>} : memref<1x8x128xf32, #tpu.memory_space<vmem>>, vector<1x1x128xf32>,
    %c0_17 = arith.constant 0 : index
    %c2 = arith.constant 2 : index
    %c0_18 = arith.constant 0 : index
    %27 = vector.load %arg4[%c0_17, %c2, %c0_18] : memref<1x8x128xf32, #tpu.memory_space<vmem>>, vector<1x1x128xf32>
    %28 = vector.shape_cast %27 : vector<1x1x128xf32> to vector<1x128xf32>
    %cst_19 = arith.constant dense<0.000000e+00> : vector<128xf32>
    %29 = vector.multi_reduction <add>, %4, %cst_19 [0] : vector<16x128xf32> to vector<128xf32>
    %30 = vector.shape_cast %29 : vector<128xf32> to vector<1x128xf32>
    %31 = arith.addf %28, %30 : vector<1x128xf32>
    %c0_20 = arith.constant 0 : index
    %c2_21 = arith.constant 2 : index
    %c0_22 = arith.constant 0 : index
    %32 = vector.load %arg4[%c0_20, %c2_21, %c0_22] : memref<1x8x128xf32, #tpu.memory_space<vmem>>, vector<1x1x128xf32>
    %33 = vector.shape_cast %32 : vector<1x1x128xf32> to vector<1x128xf32>
    %34 = vector.shape_cast %31 : vector<1x128xf32> to vector<1x1x128xf32>
    tpu.vector_store %arg4[%c0_20, %c2_21, %c0_22], %34 {strides = array<i32>} : memref<1x8x128xf32, #tpu.memory_space<vmem>>, vector<1x1x128xf32>,
    return
  }
  func.func @transform_0(%arg0: i32, %arg1: i32) -> (i32, i32) {
    %c1_i32 = arith.constant 1 : i32
    %0 = arith.muli %arg0, %c1_i32 : i32
    %1 = arith.addi %0, %arg1 : i32
    %c0_i32 = arith.constant 0 : i32
    %c0_i32_0 = arith.constant 0 : i32
    return %1, %c0_i32 : i32, i32
  }
  func.func @transform_1(%arg0: i32, %arg1: i32) -> (i32, i32) {
    %c1_i32 = arith.constant 1 : i32
    %0 = arith.muli %arg0, %c1_i32 : i32
    %1 = arith.addi %0, %arg1 : i32
    %c0_i32 = arith.constant 0 : i32
    %c0_i32_0 = arith.constant 0 : i32
    return %1, %c0_i32 : i32, i32
  }
  func.func @transform_2(%arg0: i32, %arg1: i32) -> (i32, i32, i32) {
    %c0_i32 = arith.constant 0 : i32
    %c0_i32_0 = arith.constant 0 : i32
    %c0_i32_1 = arith.constant 0 : i32
    return %arg0, %c0_i32, %c0_i32_0 : i32, i32, i32
  }
}

</mosaic_0001>

<llo_original>
// kernel: dice_loss.1
$region0: #{dice_loss.1}
  #allocation0 [shape = 'u32[]', space=smem, size = 0x4, offset = 0x4, fixed_abs, tag = 'smem constant byte address 0x4 - core index']
  #allocation1 [shape = 'u32[144,128]{1,0:T(1,128)}', space=vmem, size = 0x12000, scoped, tag = 'internal scratch']
  %s0 = inlined_call_operand.vmem [shape: f32[16,128], index: 0, kind: input, shape index: {}]
  %s1 = inlined_call_operand.vmem [shape: f32[16,128], index: 1, kind: input, shape index: {}]
  %s2 = inlined_call_operand.vmem [shape: f32[1,8,128], index: 2, kind: output, shape index: {}]
  %s3 = sld [smem:[#allocation0]]
  $region22: #{dice_loss.1} parent=0
    _
  %s5 = ssub.s32 1, %s3
  %s6 = scalar_select 0, %s5, %s3
  // Predicated region
  $region2: #{dice_loss.1} parent=0 // pred_check
    _
  $region3: #{dice_loss.1} parent=0 // pred_check_branch
    %8 = sbr.rel (0) target = $region5
  $region4: #{dice_loss.1} parent=0 // pred_region
    %s9 = sadd.s32 0, 0
    %s10 = smul.u32 2, %s9
    %p11 = scmp.lt.s32.totalorder %s10, 1
    %s12 = scalar_select %p11, %s10, 1
    %s13 = smul.addr %s12, 8
    %s14 = scalar_lea.vmem %s0, %s13
    %s15 = sadd.s32 0, 0
    %s16 = smul.u32 2, %s15
  $region5: #{dice_loss.1} parent=0 // pred_fallthru
    _
  // Predicated region
  $region6: #{dice_loss.1} parent=0 // pred_check
    _
  $region7: #{dice_loss.1} parent=0 // pred_check_branch
    %18 = sbr.rel (0) target = $region9
  $region8: #{dice_loss.1} parent=0 // pred_region
    %s19 = sadd.s32 0, 0
    %s20 = smul.u32 2, %s19
    %p21 = scmp.lt.s32.totalorder %s20, 1
    %s22 = scalar_select %p21, %s20, 1
    %s23 = smul.addr %s22, 8
    %s24 = scalar_lea.vmem %s1, %s23
    %s25 = sadd.s32 0, 0
    %s26 = smul.u32 2, %s25
  $region9: #{dice_loss.1} parent=0 // pred_fallthru
    _
  %s27 = sadd.s32 0, 0
  %s28 = smul.u32 2, %s27
  %p29 = scmp.lt.s32.totalorder %s28, 1
  %s30 = scalar_select %p29, %s28, 1
  %s31 = smul.addr %s30, 8
  %s32 = scalar_lea.vmem %s0, %s31
  %s33 = sadd.s32 0, 0
  %s34 = smul.u32 2, %s33
  %p35 = scmp.lt.s32.totalorder %s34, 1
  %s36 = scalar_select %p35, %s34, 1
  %s37 = smul.addr %s36, 8
  %s38 = scalar_lea.vmem %s1, %s37
  %s39 = sadd.s32 0, 0
  %s40 = smul.u32 2, %s39
  %p41 = scmp.lt.s32.totalorder %s40, 1
  %s42 = scalar_select %p41, %s40, 1
  %s43 = smul.addr %s42, 8
  %s44 = scalar_lea.vmem %s0, %s43
  %s45 = sadd.s32 0, 0
  %s46 = smul.u32 2, %s45
  %s47 = sadd.s32 0, 0
  %s48 = smul.u32 2, %s47
  %p49 = scmp.lt.s32.totalorder %s48, 1
  %s50 = scalar_select %p49, %s48, 1
  %s51 = smul.addr %s50, 8
  %s52 = scalar_lea.vmem %s1, %s51
  %s53 = sadd.s32 0, 0
  %s54 = smul.u32 2, %s53
  %p55 = scmp.eq.s32.totalorder 0, 0
  // Predicated region
  $region10: #{dice_loss.1} parent=0 // pred_check
    %p56 = pneg %p55
  $region11: #{dice_loss.1} parent=0 // pred_check_branch
    %58 = sbr.rel (%p56) target = $region13
  $region12: #{dice_loss.1} parent=0 // pred_region
    %59 = vst [vmem:[%s2] sm:$0xff] 0.0
  $region13: #{dice_loss.1} parent=0 // pred_fallthru
    _
  %v60 = vld [vmem:[%s44] sm:$0xff]
  %v61 = vld [vmem:[%s44 + $0x8] sm:$0xff]
  %v62 = vld [vmem:[%s52] sm:$0xff]
  %v63 = vld [vmem:[%s52 + $0x8] sm:$0xff]
  %v64 = vxor.u32 %v60, 2147483648
  %v65 = vxor.u32 %v61, 2147483648
  %v66 = vmul.f32 %v64, 1.442695
  %v67 = vpow.pop %v66
  %v68 = vmul.f32 %v65, 1.442695
  %v69 = vpow.pop %v68
  %v70 = vadd.f32 %v67, 1.0
  %v71 = vadd.f32 %v69, 1.0
  %v72 = vrcp.pop %v70
  %v73 = vmul.f32 1.0, %v72
  %v74 = vrcp.pop %v71
  %v75 = vmul.f32 1.0, %v74
  %v76 = vld [vmem:[%s2] sm:$0x1]
  %v77 = vmul.f32 %v73, %v62
  %v78 = vmul.f32 %v75, %v63
  %v79 = vadd.f32 %v77, %v78
  %v80 = vrot.slane %v79, 4
  %v81 = vadd.f32 %v79, %v80
  %v82 = vrot.slane %v81, 2
  %v83 = vadd.f32 %v81, %v82
  %v84 = vrot.slane %v83, 1
  %v85 = vadd.f32 %v83, %v84
  %v86 = vadd.f32 %v76, %v85
  %87 = vst [vmem:[%s2] sm:$0x1] %v86
  %v88 = vld [vmem:[%s2 + $0x1] sm:$0x1]
  %v89 = vadd.f32 %v73, %v75
  %v90 = vrot.slane %v89, 4
  %v91 = vadd.f32 %v89, %v90
  %v92 = vrot.slane %v91, 2
  %v93 = vadd.f32 %v91, %v92
  %v94 = vrot.slane %v93, 1
  %v95 = vadd.f32 %v93, %v94
  %v96 = vadd.f32 %v88, %v95
  %97 = vst [vmem:[%s2 + $0x1] sm:$0x1] %v96
  %v98 = vld [vmem:[%s2 + $0x2] sm:$0x1]
  %v99 = vadd.f32 %v62, %v63
  %v100 = vrot.slane %v99, 4
  %v101 = vadd.f32 %v99, %v100
  %v102 = vrot.slane %v101, 2
  %v103 = vadd.f32 %v101, %v102
  %v104 = vrot.slane %v103, 1
  %v105 = vadd.f32 %v103, %v104
  %v106 = vadd.f32 %v98, %v105
  %107 = vst [vmem:[%s2 + $0x2] sm:$0x1] %v106
  // Predicated region
  $region14: #{dice_loss.1} parent=0 // pred_check
    _
  $region15: #{dice_loss.1} parent=0 // pred_check_branch
    %109 = sbr.rel (0) target = $region17
  $region16: #{dice_loss.1} parent=0 // pred_region
    _
  $region17: #{dice_loss.1} parent=0 // pred_fallthru
    _
  // Predicated region
  $region18: #{dice_loss.1} parent=0 // pred_check
    _
  $region19: #{dice_loss.1} parent=0 // pred_check_branch
    %111 = sbr.rel (0) target = $region21
  $region20: #{dice_loss.1} parent=0 // pred_region
    _
  $region21: #{dice_loss.1} parent=0 // pred_fallthru
    _

</llo_original>
